<compile_context>
chip_gen: v5e
topology: v5e:2x2
jax: 0.10.0
libtpu: 0.0.40
codegen_flags: <defaults>
</compile_context>

<pallas_src>
import functools
import math

import jax
import jax.numpy as jnp
from jax import lax
from jax.experimental import pallas as pl
from jax.experimental.pallas import tpu as pltpu


def _pad_amounts(kernel_size):
    if kernel_size % 2 == 0:
        return kernel_size // 2 - 1, kernel_size // 2
    return kernel_size // 2, kernel_size // 2


def _round_up(v, m):
    return ((v + m - 1) // m) * m


def _cdiv(a, b):
    return (a + b - 1) // b


# -----------------------------------------------------------------------------
# Pallas kernel
# -----------------------------------------------------------------------------
def _moving_avg_kernel(lh_ref, core_ref, rh_ref, out_ref, ext_ref, s8_ref, *,
                       kernel_size, pad_left, pad_right, hb, lt, cb, seq_len,
                       num_t, chunk, use_hier, q, r, n8_chunks,
                       fix_second_last):
    # lh_ref : (hb, cb)   rows just before this tile's core rows
    # core_ref: (lt, cb)  core input rows for this output tile
    # rh_ref : (hb, cb)   rows just after this tile's core rows
    # out_ref: (lt, cb)
    # ext_ref: (ext_rows, cb) VMEM scratch = contiguous padded window
    # s8_ref : (s8_rows, cb) f32 VMEM scratch of 8-wide partial sums
    tt = pl.program_id(2)
    base = hb - pad_left                 # ext row of the first used (padded) row
    used_end = hb + lt + pad_right       # one-past-last used ext row

    # ---- stage halos + core into one contiguous padded window (VMEM only) ---
    if pad_left > 0:
        ext_ref[pl.ds(base, pad_left), :] = lh_ref[pl.ds(hb - pad_left, pad_left), :]
    ext_ref[pl.ds(hb, lt), :] = core_ref[...]
    if pad_right > 0:
        ext_ref[pl.ds(hb + lt, pad_right), :] = rh_ref[pl.ds(0, pad_right), :]

    # ---- replicate-pad fix-ups (all offsets static inside each branch) ------
    if pad_left > 0:
        @pl.when(tt == 0)
        def _left_edge():
            first = ext_ref[pl.ds(hb, 1), :]
            ext_ref[pl.ds(base, pad_left), :] = jnp.broadcast_to(first, (pad_left, cb))

    def _right_edge_fix(tile_idx):
        last_valid = hb + (seq_len - 1 - tile_idx * lt)   # ext row holding x[:, L-1]
        n_bad = used_end - (last_valid + 1)
        if n_bad <= 0:
            return

        @pl.when(tt == tile_idx)
        def _right_edge():
            last = ext_ref[pl.ds(last_valid, 1), :]
            ext_ref[pl.ds(last_valid + 1, n_bad), :] = jnp.broadcast_to(last, (n_bad, cb))

    _right_edge_fix(num_t - 1)
    if fix_second_last:                   # thin last tile: tile T-2 also sees edge
        _right_edge_fix(num_t - 2)

    inv_k = 1.0 / kernel_size
    n_chunks = lt // chunk

    if use_hier:
        # ---- stage 1: 8-wide partial sums, built once per tile --------------
        def s8_body(ci, carry):
            e0 = pl.multiple_of(ci * chunk, chunk)
            acc = ext_ref[pl.ds(base + e0, chunk), :].astype(jnp.float32)
            for j in range(1, 8):         # the only sub-8-offset reads
                acc = acc + ext_ref[pl.ds(base + e0 + j, chunk), :].astype(jnp.float32)
            s8_ref[pl.ds(e0, chunk), :] = acc
            return carry

        lax.fori_loop(0, n8_chunks, s8_body, 0)

        # ---- stage 2: window sum = q aligned S8 reads + r tail rows ---------
        def out_body(ci, carry):
            i0 = pl.multiple_of(ci * chunk, chunk)
            acc = s8_ref[pl.ds(i0, chunk), :]
            for t in range(1, q):         # 8-aligned f32 reads
                acc = acc + s8_ref[pl.ds(i0 + 8 * t, chunk), :]
            for j in range(r):            # <= 7 remainder rows
                acc = acc + ext_ref[pl.ds(base + i0 + 8 * q + j, chunk), :].astype(jnp.float32)
            out_ref[pl.ds(i0, chunk), :] = (acc * inv_k).astype(out_ref.dtype)
            return carry

        lax.fori_loop(0, n_chunks, out_body, 0)
    else:
        # small kernels: direct unrolled sum (<= 15 loads per row)
        def out_body(ci, carry):
            i0 = pl.multiple_of(ci * chunk, chunk)
            acc = ext_ref[pl.ds(base + i0, chunk), :].astype(jnp.float32)
            for j in range(1, kernel_size):
                acc = acc + ext_ref[pl.ds(base + i0 + j, chunk), :].astype(jnp.float32)
            out_ref[pl.ds(i0, chunk), :] = (acc * inv_k).astype(out_ref.dtype)
            return carry

        lax.fori_loop(0, n_chunks, out_body, 0)


# -----------------------------------------------------------------------------
# Wrapper
# -----------------------------------------------------------------------------
def _moving_avg_fallback(x, kernel_size, stride):
    # Pure-JAX path: exact module semantics (replicate pad + AvgPool1d).
    pad_l, pad_r = _pad_amounts(kernel_size)
    front = jnp.repeat(x[:, :1, :], pad_l, axis=1)
    end = jnp.repeat(x[:, -1:, :], pad_r, axis=1)
    xp = jnp.concatenate([front, x, end], axis=1)
    s = lax.reduce_window(xp.astype(jnp.float32), 0.0, lax.add,
                          (1, kernel_size, 1), (1, stride, 1), "VALID")
    return (s / kernel_size).astype(x.dtype)


def _pick_channel_tile(F):
    if F <= 512:
        return F
    for cand in (512, 256, 128):
        if F % cand == 0:
            return cand
    return F


def _moving_avg_pallas(x, kernel_size, time_tile=None):
    """x: (Bk, L, F); moving average along axis 1.  Returns None if it cannot fit."""
    Bk, L, F = x.shape
    pad_l, pad_r = _pad_amounts(kernel_size)
    itemsize = jnp.dtype(x.dtype).itemsize

    cb = _pick_channel_tile(F)                        # channel tile (full F or divisor)
    c_tiles = F // cb
    cb_pad = _round_up(max(cb, 128), 128)             # lane-padded width in VMEM

    hb = _round_up(max(pad_l, pad_r, 1), 8)           # halo block rows (mult of 8)
    chunk = min(256, max(8, ((8192 // cb_pad) // 8) * 8))   # f32 acc <= ~8 vregs
    l0 = (chunk * hb) // math.gcd(chunk, hb)          # lt must be multiple of l0

    use_hier = kernel_size >= 16
    q, r = divmod(kernel_size, 8)

    def _derive(lt_try):
        lt_ = max(l0, (lt_try // l0) * l0)
        num_t_ = _cdiv(L, lt_)
        if use_hier:
            n8_pad_ = _round_up(lt_ + 8 * (q - 1), chunk)
            s8_rows_ = n8_pad_
            ext_rows_ = max(2 * hb + lt_, (hb - pad_l) + n8_pad_ + 8)
        else:
            n8_pad_ = 0
            s8_rows_ = 8
            ext_rows_ = 2 * hb + lt_
        est_ = (2 * (2 * hb + lt_) * cb * itemsize    # lh/core/rh double-buffered
                + 2 * lt_ * cb * itemsize             # out double-buffered
                + ext_rows_ * cb * itemsize           # padded-window scratch
                + s8_rows_ * cb * 4)                  # f32 partial-sum scratch
        return lt_, num_t_, n8_pad_, s8_rows_, ext_rows_, est_

    if time_tile is not None:
        target = _round_up(max(int(time_tile), l0), l0)
    else:
        auto_rows = max(l0, ((1 << 20) // max(cb, 1)) // l0 * l0)   # ~4 MiB f32 core block
        target = min(_round_up(L, l0), auto_rows)
        # v7x megacore: keep >= 2 parallel grid tiles when batch/channel grids are 1.
        if Bk == 1 and c_tiles == 1 and L > l0:
            target = min(target, _round_up(_cdiv(L, 2), l0))

    budget = 36 << 20
    lt, num_t, n8_pad, s8_rows, ext_rows, est = _derive(target)
    while est > budget and lt > l0:
        lt, num_t, n8_pad, s8_rows, ext_rows, est = _derive(lt // 2)
    if est > budget:
        return None

    assert lt % hb == 0 and lt % chunk == 0
    assert lt >= pad_l and lt >= pad_r and hb >= max(pad_l, pad_r)

    r_last = L - (num_t - 1) * lt
    fix_second_last = (num_t >= 2) and (r_last < pad_r)
    rl = lt // hb
    n_hblocks = _cdiv(L, hb)

    kernel = functools.partial(
        _moving_avg_kernel,
        kernel_size=kernel_size, pad_left=pad_l, pad_right=pad_r,
        hb=hb, lt=lt, cb=cb, seq_len=L, num_t=num_t, chunk=chunk,
        use_hier=use_hier, q=q, r=r,
        n8_chunks=(n8_pad // chunk if use_hier else 0),
        fix_second_last=fix_second_last)

    lh_spec = pl.BlockSpec(
        (None, hb, cb), lambda b, c, t: (b, jnp.maximum(t * rl - 1, 0), c))
    core_spec = pl.BlockSpec((None, lt, cb), lambda b, c, t: (b, t, c))
    rh_spec = pl.BlockSpec(
        (None, hb, cb),
        lambda b, c, t: (b, jnp.minimum((t + 1) * rl, n_hblocks - 1), c))
    out_spec = pl.BlockSpec((None, lt, cb), lambda b, c, t: (b, t, c))

    adds = (8 + q + r) if use_hier else kernel_size
    cost = pl.CostEstimate(
        flops=int(Bk * F * L * (adds + 1)),
        transcendentals=0,
        bytes_accessed=int(Bk * F * itemsize * 2 * L
                           + Bk * num_t * 2 * hb * F * itemsize),
    )

    vmem_limit = min(int(est * 1.3) + (2 << 20), 64 << 20)

    return pl.pallas_call(
        kernel,
        out_shape=jax.ShapeDtypeStruct((Bk, L, F), x.dtype),
        grid=(Bk, c_tiles, num_t),
        in_specs=[lh_spec, core_spec, rh_spec],
        out_specs=out_spec,
        scratch_shapes=[pltpu.VMEM((ext_rows, cb), x.dtype),
                        pltpu.VMEM((s8_rows, cb), jnp.float32)],
        compiler_params=pltpu.CompilerParams(
            dimension_semantics=("parallel", "parallel", "parallel"),
            vmem_limit_bytes=vmem_limit),
        cost_estimate=cost,
    )(x, x, x)


def moving_avg(x, kernel_size, stride=1, *, use_pallas=None, time_tile=None):
    """Moving average (replicate pad + AvgPool1d) over the time axis of (B, L, C)."""
    assert x.ndim == 3, "expected (batch, time, channels)"
    B, L, C = x.shape
    kernel_size = int(kernel_size)
    stride = int(stride)

    # TODO(synk): stride != 1 and very large kernels use the XLA fallback path.
    supported = (stride == 1 and 2 <= kernel_size <= 128 and L >= kernel_size)
    if use_pallas is None:
        # tiny problems: pallas_call launch/step overhead dominates -> fallback
        use_pallas = supported and B * L * C >= 32768
    if use_pallas and not supported:
        use_pallas = False
    if not use_pallas:
        return _moving_avg_fallback(x, kernel_size, stride)

    # Lane-density repack: fold batch into channels when C is narrow, so the
    # kernel's last dim (lanes) is as dense as possible.
    fold = (C < 128) and (B == 1 or C <= 32)
    if fold:
        xk = jnp.transpose(x, (1, 0, 2)).reshape(1, L, B * C)
    else:
        xk = x

    out = _moving_avg_pallas(xk, kernel_size, time_tile=time_tile)
    if out is None:                       # could not fit VMEM budget
        return _moving_avg_fallback(x, kernel_size, stride)

    if fold:
        out = out.reshape(L, B, C).transpose(1, 0, 2)
    return out


# -----------------------------------------------------------------------------
# Reference + tests
# -----------------------------------------------------------------------------
def _reference(x, kernel_size, stride=1):
    # Literal transcription of MovingAvg.forward (pure JAX).
    pad_l, pad_r = _pad_amounts(kernel_size)
    front = jnp.repeat(x[:, :1, :], pad_l, axis=1)
    end = jnp.repeat(x[:, -1:, :], pad_r, axis=1)
    xp = jnp.concatenate([front, x, end], axis=1)
    l_out = (xp.shape[1] - kernel_size) // stride + 1
    windows = jnp.stack(
        [xp[:, j * stride: j * stride + kernel_size, :] for j in range(l_out)],
        axis=1)  # (B, L_out, k, C)
    return windows.mean(axis=2).astype(x.dtype)


if __name__ == "__main__":
    key = jax.random.PRNGKey(0)

    def _check(x, kernel_size, stride=1, **kw):
        out = jax.block_until_ready(moving_avg(x, kernel_size, stride, **kw))
        ref = _reference(x, kernel_size, stride)
        assert out.shape == ref.shape, (out.shape, ref.shape)
        assert jnp.allclose(out, ref, atol=1e-4, rtol=1e-4), (
            f"mismatch k={kernel_size} stride={stride} shape={x.shape}")

    k1, k2, k3, k4, k5 = jax.random.split(key, 5)

    # 1) main path: odd kernel (hierarchical sum), lane-dense channels, auto dispatch
    _check(jax.random.normal(k1, (2, 256, 128), jnp.float32), kernel_size=25)

    # 2) even small kernel (direct path), narrow channels -> batch folded into lanes
    _check(jax.random.normal(k2, (2, 300, 8), jnp.float32), kernel_size=4,
           use_pallas=True)

    # 3) many time tiles, thin last tile + second-to-last fix, hierarchical path
    _check(jax.random.normal(k3, (1, 261, 16), jnp.float32), kernel_size=25,
           use_pallas=True, time_tile=64)

    # 4) mid-width channels, no fold, direct path
    _check(jax.random.normal(k4, (2, 192, 64), jnp.float32), kernel_size=7,
           use_pallas=True)

    # 5) stride != 1 -> pure-JAX fallback path (module semantics preserved)
    _check(jax.random.normal(k5, (2, 64, 8), jnp.float32), kernel_size=5, stride=2)

    print("KERNEL_OK")
</pallas_src>

<mosaic_0001>
module attributes {stable_mosaic.version = 11 : i64} {
  func.func @_moving_avg_kernel(%arg0: i32, %arg1: i32, %arg2: i32, %arg3: memref<1x16x128xf32, #tpu.memory_space<vmem>>, %arg4: memref<1x256x128xf32, #tpu.memory_space<vmem>>, %arg5: memref<1x16x128xf32, #tpu.memory_space<vmem>>, %arg6: memref<1x256x128xf32, #tpu.memory_space<vmem>>, %arg7: memref<332x128xf32, #tpu.memory_space<vmem>>, %arg8: memref<320x128xf32, #tpu.memory_space<vmem>>) attributes {dimension_semantics = [#tpu.dimension_semantics<parallel>, #tpu.dimension_semantics<parallel>, #tpu.dimension_semantics<parallel>], iteration_bounds = array<i64: 2, 1, 1>, scalar_prefetch = 0 : i64, scratch_operands = 2 : i64, tpu.core_type = #tpu.core_type<tc>, window_params = [{transform_indices = @transform_0, window_bounds = array<i64: 1, 16, 128>}, {transform_indices = @transform_1, window_bounds = array<i64: 1, 256, 128>}, {transform_indices = @transform_2, window_bounds = array<i64: 1, 16, 128>}, {transform_indices = @transform_3, window_bounds = array<i64: 1, 256, 128>}]} {
    %c0 = arith.constant 0 : index
    %c4 = arith.constant 4 : index
    %c0_0 = arith.constant 0 : index
    %0 = vector.load %arg3[%c0, %c4, %c0_0] : memref<1x16x128xf32, #tpu.memory_space<vmem>>, vector<1x12x128xf32>
    %1 = vector.shape_cast %0 : vector<1x12x128xf32> to vector<12x128xf32>
    %c4_1 = arith.constant 4 : index
    %c0_2 = arith.constant 0 : index
    %2 = vector.load %arg7[%c4_1, %c0_2] : memref<332x128xf32, #tpu.memory_space<vmem>>, vector<12x128xf32>
    tpu.vector_store %arg7[%c4_1, %c0_2], %1 {strides = array<i32>} : memref<332x128xf32, #tpu.memory_space<vmem>>, vector<12x128xf32>,
    %c0_3 = arith.constant 0 : index
    %c0_4 = arith.constant 0 : index
    %c0_5 = arith.constant 0 : index
    %3 = vector.load %arg4[%c0_3, %c0_4, %c0_5] : memref<1x256x128xf32, #tpu.memory_space<vmem>>, vector<1x256x128xf32>
    %4 = vector.shape_cast %3 : vector<1x256x128xf32> to vector<256x128xf32>
    %c16 = arith.constant 16 : index
    %c0_6 = arith.constant 0 : index
    %5 = vector.load %arg7[%c16, %c0_6] : memref<332x128xf32, #tpu.memory_space<vmem>>, vector<256x128xf32>
    tpu.vector_store %arg7[%c16, %c0_6], %4 {strides = array<i32>} : memref<332x128xf32, #tpu.memory_space<vmem>>, vector<256x128xf32>,
    %c0_7 = arith.constant 0 : index
    %c0_8 = arith.constant 0 : index
    %c0_9 = arith.constant 0 : index
    %6 = vector.load %arg5[%c0_7, %c0_8, %c0_9] : memref<1x16x128xf32, #tpu.memory_space<vmem>>, vector<1x12x128xf32>
    %7 = vector.shape_cast %6 : vector<1x12x128xf32> to vector<12x128xf32>
    %c272 = arith.constant 272 : index
    %c0_10 = arith.constant 0 : index
    %8 = vector.load %arg7[%c272, %c0_10] : memref<332x128xf32, #tpu.memory_space<vmem>>, vector<12x128xf32>
    tpu.vector_store %arg7[%c272, %c0_10], %7 {strides = array<i32>} : memref<332x128xf32, #tpu.memory_space<vmem>>, vector<12x128xf32>,
    %c0_i32 = arith.constant 0 : i32
    %9 = arith.cmpi eq, %arg2, %c0_i32 : i32
    %10 = arith.extui %9 : i1 to i32
    %c0_i32_11 = arith.constant 0 : i32
    %11 = arith.cmpi ne, %10, %c0_i32_11 : i32
    scf.if %11 {
      %c16_19 = arith.constant 16 : index
      %c0_20 = arith.constant 0 : index
      %17 = vector.load %arg7[%c16_19, %c0_20] : memref<332x128xf32, #tpu.memory_space<vmem>>, vector<1x128xf32>
      %18 = vector.shape_cast %17 : vector<1x128xf32> to vector<1x128xf32>
      %19 = vector.broadcast %18 : vector<1x128xf32> to vector<12x128xf32>
      %c4_21 = arith.constant 4 : index
      %c0_22 = arith.constant 0 : index
      %20 = vector.load %arg7[%c4_21, %c0_22] : memref<332x128xf32, #tpu.memory_space<vmem>>, vector<12x128xf32>
      tpu.vector_store %arg7[%c4_21, %c0_22], %19 {strides = array<i32>} : memref<332x128xf32, #tpu.memory_space<vmem>>, vector<12x128xf32>,
    } else {
    }
    %c0_i32_12 = arith.constant 0 : i32
    %12 = arith.cmpi eq, %arg2, %c0_i32_12 : i32
    %13 = arith.extui %12 : i1 to i32
    %c0_i32_13 = arith.constant 0 : i32
    %14 = arith.cmpi ne, %13, %c0_i32_13 : i32
    scf.if %14 {
      %c271 = arith.constant 271 : index
      %c0_19 = arith.constant 0 : index
      %17 = vector.load %arg7[%c271, %c0_19] : memref<332x128xf32, #tpu.memory_space<vmem>>, vector<1x128xf32>
      %18 = vector.shape_cast %17 : vector<1x128xf32> to vector<1x128xf32>
      %19 = vector.broadcast %18 : vector<1x128xf32> to vector<12x128xf32>
      %c272_20 = arith.constant 272 : index
      %c0_21 = arith.constant 0 : index
      %20 = vector.load %arg7[%c272_20, %c0_21] : memref<332x128xf32, #tpu.memory_space<vmem>>, vector<12x128xf32>
      tpu.vector_store %arg7[%c272_20, %c0_21], %19 {strides = array<i32>} : memref<332x128xf32, #tpu.memory_space<vmem>>, vector<12x128xf32>,
    } else {
    }
    %c0_i32_14 = arith.constant 0 : i32
    %c5_i32 = arith.constant 5 : i32
    %15 = arith.addi %c0_i32_14, %c5_i32 : i32
    %c1_i32 = arith.constant 1 : i32
    scf.for %arg9 = %c0_i32_14 to %15 step %c1_i32  : i32 {
      %c64_i32 = arith.constant 64 : i32
      %17 = arith.muli %arg9, %c64_i32 : i32
      %18 = tpu.assume_multiple %17, 64 : i32
      %c4_i32_19 = arith.constant 4 : i32
      %19 = arith.addi %c4_i32_19, %18 : i32
      %20 = arith.index_cast %19 : i32 to index
      %c0_20 = arith.constant 0 : index
      %21 = vector.load %arg7[%20, %c0_20] : memref<332x128xf32, #tpu.memory_space<vmem>>, vector<64x128xf32>
      %c4_i32_21 = arith.constant 4 : i32
      %22 = arith.addi %c4_i32_21, %18 : i32
      %c1_i32_22 = arith.constant 1 : i32
      %23 = arith.addi %22, %c1_i32_22 : i32
      %24 = arith.index_cast %23 : i32 to index
      %c0_23 = arith.constant 0 : index
      %25 = vector.load %arg7[%24, %c0_23] : memref<332x128xf32, #tpu.memory_space<vmem>>, vector<64x128xf32>
      %26 = arith.addf %21, %25 : vector<64x128xf32>
      %c4_i32_24 = arith.constant 4 : i32
      %27 = arith.addi %c4_i32_24, %18 : i32
      %c2_i32 = arith.constant 2 : i32
      %28 = arith.addi %27, %c2_i32 : i32
      %29 = arith.index_cast %28 : i32 to index
      %c0_25 = arith.constant 0 : index
      %30 = vector.load %arg7[%29, %c0_25] : memref<332x128xf32, #tpu.memory_space<vmem>>, vector<64x128xf32>
      %31 = arith.addf %26, %30 : vector<64x128xf32>
      %c4_i32_26 = arith.constant 4 : i32
      %32 = arith.addi %c4_i32_26, %18 : i32
      %c3_i32 = arith.constant 3 : i32
      %33 = arith.addi %32, %c3_i32 : i32
      %34 = arith.index_cast %33 : i32 to index
      %c0_27 = arith.constant 0 : index
      %35 = vector.load %arg7[%34, %c0_27] : memref<332x128xf32, #tpu.memory_space<vmem>>, vector<64x128xf32>
      %36 = arith.addf %31, %35 : vector<64x128xf32>
      %c4_i32_28 = arith.constant 4 : i32
      %37 = arith.addi %c4_i32_28, %18 : i32
      %c4_i32_29 = arith.constant 4 : i32
      %38 = arith.addi %37, %c4_i32_29 : i32
      %39 = arith.index_cast %38 : i32 to index
      %c0_30 = arith.constant 0 : index
      %40 = vector.load %arg7[%39, %c0_30] : memref<332x128xf32, #tpu.memory_space<vmem>>, vector<64x128xf32>
      %41 = arith.addf %36, %40 : vector<64x128xf32>
      %c4_i32_31 = arith.constant 4 : i32
      %42 = arith.addi %c4_i32_31, %18 : i32
      %c5_i32_32 = arith.constant 5 : i32
      %43 = arith.addi %42, %c5_i32_32 : i32
      %44 = arith.index_cast %43 : i32 to index
      %c0_33 = arith.constant 0 : index
      %45 = vector.load %arg7[%44, %c0_33] : memref<332x128xf32, #tpu.memory_space<vmem>>, vector<64x128xf32>
      %46 = arith.addf %41, %45 : vector<64x128xf32>
      %c4_i32_34 = arith.constant 4 : i32
      %47 = arith.addi %c4_i32_34, %18 : i32
      %c6_i32 = arith.constant 6 : i32
      %48 = arith.addi %47, %c6_i32 : i32
      %49 = arith.index_cast %48 : i32 to index
      %c0_35 = arith.constant 0 : index
      %50 = vector.load %arg7[%49, %c0_35] : memref<332x128xf32, #tpu.memory_space<vmem>>, vector<64x128xf32>
      %51 = arith.addf %46, %50 : vector<64x128xf32>
      %c4_i32_36 = arith.constant 4 : i32
      %52 = arith.addi %c4_i32_36, %18 : i32
      %c7_i32 = arith.constant 7 : i32
      %53 = arith.addi %52, %c7_i32 : i32
      %54 = arith.index_cast %53 : i32 to index
      %c0_37 = arith.constant 0 : index
      %55 = vector.load %arg7[%54, %c0_37] : memref<332x128xf32, #tpu.memory_space<vmem>>, vector<64x128xf32>
      %56 = arith.addf %51, %55 : vector<64x128xf32>
      %57 = arith.index_cast %18 : i32 to index
      %c0_38 = arith.constant 0 : index
      %58 = vector.load %arg8[%57, %c0_38] : memref<320x128xf32, #tpu.memory_space<vmem>>, vector<64x128xf32>
      tpu.vector_store %arg8[%57, %c0_38], %56 {strides = array<i32>} : memref<320x128xf32, #tpu.memory_space<vmem>>, vector<64x128xf32>,
    }
    %c5_i32_15 = arith.constant 5 : i32
    %c0_i32_16 = arith.constant 0 : i32
    %c4_i32 = arith.constant 4 : i32
    %16 = arith.addi %c0_i32_16, %c4_i32 : i32
    %c1_i32_17 = arith.constant 1 : i32
    scf.for %arg9 = %c0_i32_16 to %16 step %c1_i32_17  : i32 {
      %c64_i32 = arith.constant 64 : i32
      %17 = arith.muli %arg9, %c64_i32 : i32
      %18 = tpu.assume_multiple %17, 64 : i32
      %19 = arith.index_cast %18 : i32 to index
      %c0_19 = arith.constant 0 : index
      %20 = vector.load %arg8[%19, %c0_19] : memref<320x128xf32, #tpu.memory_space<vmem>>, vector<64x128xf32>
      %c8_i32 = arith.constant 8 : i32
      %21 = arith.addi %18, %c8_i32 : i32
      %22 = arith.index_cast %21 : i32 to index
      %c0_20 = arith.constant 0 : index
      %23 = vector.load %arg8[%22, %c0_20] : memref<320x128xf32, #tpu.memory_space<vmem>>, vector<64x128xf32>
      %24 = arith.addf %20, %23 : vector<64x128xf32>
      %c16_i32 = arith.constant 16 : i32
      %25 = arith.addi %18, %c16_i32 : i32
      %26 = arith.index_cast %25 : i32 to index
      %c0_21 = arith.constant 0 : index
      %27 = vector.load %arg8[%26, %c0_21] : memref<320x128xf32, #tpu.memory_space<vmem>>, vector<64x128xf32>
      %28 = arith.addf %24, %27 : vector<64x128xf32>
      %c4_i32_22 = arith.constant 4 : i32
      %29 = arith.addi %c4_i32_22, %18 : i32
      %c24_i32 = arith.constant 24 : i32
      %30 = arith.addi %29, %c24_i32 : i32
      %c0_i32_23 = arith.constant 0 : i32
      %31 = arith.addi %30, %c0_i32_23 : i32
      %32 = arith.index_cast %31 : i32 to index
      %c0_24 = arith.constant 0 : index
      %33 = vector.load %arg7[%32, %c0_24] : memref<332x128xf32, #tpu.memory_space<vmem>>, vector<64x128xf32>
      %34 = arith.addf %28, %33 : vector<64x128xf32>
      %cst = arith.constant 4.000000e-02 : f32
      %35 = vector.broadcast %cst : f32 to vector<64x128xf32>
      %36 = arith.mulf %34, %35 : vector<64x128xf32>
      %c0_25 = arith.constant 0 : index
      %37 = arith.index_cast %18 : i32 to index
      %c0_26 = arith.constant 0 : index
      %38 = vector.load %arg6[%c0_25, %37, %c0_26] : memref<1x256x128xf32, #tpu.memory_space<vmem>>, vector<1x64x128xf32>
      %39 = vector.shape_cast %38 : vector<1x64x128xf32> to vector<64x128xf32>
      %40 = vector.shape_cast %36 : vector<64x128xf32> to vector<1x64x128xf32>
      tpu.vector_store %arg6[%c0_25, %37, %c0_26], %40 {strides = array<i32>} : memref<1x256x128xf32, #tpu.memory_space<vmem>>, vector<1x64x128xf32>,
    }
    %c4_i32_18 = arith.constant 4 : i32
    return
  }
  func.func @transform_0(%arg0: i32, %arg1: i32, %arg2: i32) -> (i32, i32, i32) {
    %c16_i32 = arith.constant 16 : i32
    %0 = arith.muli %arg2, %c16_i32 : i32
    %c1_i32 = arith.constant 1 : i32
    %1 = arith.subi %0, %c1_i32 : i32
    %c0_i32 = arith.constant 0 : i32
    %2 = arith.maxsi %1, %c0_i32 : i32
    %c0_i32_0 = arith.constant 0 : i32
    return %arg0, %2, %arg1 : i32, i32, i32
  }
  func.func @transform_1(%arg0: i32, %arg1: i32, %arg2: i32) -> (i32, i32, i32) {
    %c0_i32 = arith.constant 0 : i32
    return %arg0, %arg2, %arg1 : i32, i32, i32
  }
  func.func @transform_2(%arg0: i32, %arg1: i32, %arg2: i32) -> (i32, i32, i32) {
    %c1_i32 = arith.constant 1 : i32
    %0 = arith.addi %arg2, %c1_i32 : i32
    %c16_i32 = arith.constant 16 : i32
    %1 = arith.muli %0, %c16_i32 : i32
    %c15_i32 = arith.constant 15 : i32
    %2 = arith.minsi %1, %c15_i32 : i32
    %c0_i32 = arith.constant 0 : i32
    return %arg0, %2, %arg1 : i32, i32, i32
  }
  func.func @transform_3(%arg0: i32, %arg1: i32, %arg2: i32) -> (i32, i32, i32) {
    %c0_i32 = arith.constant 0 : i32
    return %arg0, %arg2, %arg1 : i32, i32, i32
  }
}

</mosaic_0001>

<llo_original>
// kernel: tpu_custom_call.1
$region0: #{tpu_custom_call.1}
  #allocation0 [shape = 'u32[]', space=smem, size = 0x4, offset = 0x4, fixed_abs, tag = 'smem constant byte address 0x4 - core index']
  #allocation1 [shape = 'u32[72,128]{1,0:T(1,128)}', space=vmem, size = 0x9000, scoped, tag = 'internal scratch']
  #allocation2 [shape = 'f32[332,128]{1,0:T(8,128)}', space=vmem, size = 0x2a000, scoped, tag = 'scratch operand']
  #allocation3 [shape = 'f32[320,128]{1,0:T(8,128)}', space=vmem, size = 0x28000, scoped, tag = 'scratch operand']
  %s0 = inlined_call_operand.hbm [shape: f32[2,256,128], index: 0, kind: input, shape index: {}]
  %s1 = inlined_call_operand.hbm [shape: f32[2,256,128], index: 1, kind: input, shape index: {}]
  %s2 = inlined_call_operand.hbm [shape: f32[2,256,128], index: 2, kind: input, shape index: {}]
  %s3 = inlined_call_operand.hbm [shape: f32[2,256,128], index: 3, kind: output, shape index: {}]
  %s4 = sld [smem:[#allocation0]]
  $region75: #{tpu_custom_call.1} parent=0
    _
  %s6 = ssub.s32 1, %s4
  %s7 = scalar_select 0, %s6, %s4
  $region1: #{tpu_custom_call.1} parent=0
    #allocation4 [shape = 'u8[16384]{0}', space=vmem, size = 0x4000, scoped, tag = 'input window, operand 0']
    #allocation5 [shape = 's32[2]{0}', space=sflag, size = 0x8, scoped, tag = 'scoped memory for tpu_custom_call.1']
    #allocation6 [shape = 's32[2]{0}', space=sflag, size = 0x8, scoped, tag = 'scoped memory for tpu_custom_call.1']
    #allocation7 [shape = 'u8[262144]{0}', space=vmem, size = 0x40000, scoped, tag = 'input window, operand 1']
    #allocation8 [shape = 's32[2]{0}', space=sflag, size = 0x8, scoped, tag = 'scoped memory for tpu_custom_call.1']
    #allocation9 [shape = 'u8[16384]{0}', space=vmem, size = 0x4000, scoped, tag = 'input window, operand 2']
    #allocation10 [shape = 'u8[262144]{0}', space=vmem, size = 0x40000, scoped, tag = 'output window, operand 0']
    %8 = vsyncpa [#allocation5], 0
    %s9 = scalar_lea.sflag [#allocation5], 1
    %10 = vsyncpa %s9, 0
    %11 = vsyncpa [#allocation8], 0
    %s12 = scalar_lea.sflag [#allocation8], 1
    %13 = vsyncpa %s12, 0
    %14 = vsyncpa [#allocation6], 0
    %s15 = scalar_lea.sflag [#allocation6], 1
    %16 = vsyncpa %s15, 0
    loop: start=0, step=1, limit=4
    $region2: #{tpu_custom_call.1} parent=1 // loop_pre_header
      _
    $region3: #{tpu_custom_call.1} parent=1 // loop_header
      %s18 = sphi 0, %s22
      %p19 = scmp.ge.s32.totalorder %s18, 4
      %s25 = sphi 0, %s44
      %s26 = sphi 0, %s40
      %s27 = sphi 0, %s36
      %s28 = sphi 0, %s25
      %s29 = sphi 0, %s26
      %s30 = sphi 0, %s27
      %s31 = sphi 0, %s28
      %s32 = sphi 0, %s29
      %s33 = sphi 0, %s30
      %s59 = sphi 0, %s61
      %s62 = sphi 0, %s59
      %s63 = sphi 0, %s62
      %s79 = sphi 0, %s63
      %s89 = sphi 0, %s91
      %s92 = sphi 0, %s89
      %s93 = sphi 0, %s92
      %s109 = sphi 0, %s93
      %s127 = sphi 0, %s129
      %s130 = sphi 0, %s127
      %s131 = sphi 0, %s130
      %s147 = sphi 0, %s131
      %s157 = sphi 0, %s159
      %s160 = sphi 0, %s157
      %s161 = sphi 0, %s160
      %s177 = sphi 0, %s161
    $region4: #{tpu_custom_call.1} parent=1 // loop_header_branch
      %21 = sbr.rel (%p19) target = $region8
    $region5: #{tpu_custom_call.1} parent=1 // loop_body
      %s23 = ssub.s32 %s18, 1
      %s24 = ssub.s32 %s18, 2
      %s34 = sadd.s32 1, %s27
      %p35 = scmp.ge.s32.totalorder %s34, 1
      %s36 = scalar_select %p35, 0, %s34
      %s37 = sadd.s32 1, %s26
      %s38 = scalar_select %p35, %s37, %s26
      %p39 = scmp.ge.s32.totalorder %s38, 1
      %s40 = scalar_select %p39, 0, %s38
      %s41 = sadd.s32 1, %s25
      %s42 = scalar_select %p39, %s41, %s25
      %p43 = scmp.ge.s32.totalorder %s42, 2
      %s44 = scalar_select %p43, 0, %s42
      %s45 = smul.u32 %s27, 16
      %s46 = ssub.s32 %s45, 1
      %p47 = scmp.gt.s32.totalorder %s46, 0
      %s48 = scalar_select %p47, %s46, 0
      %s49 = smul.u32 %s36, 16
      %s50 = ssub.s32 %s49, 1
      %p51 = scmp.gt.s32.totalorder %s50, 0
      %s52 = scalar_select %p51, %s50, 0
      %s53 = ssub.s32 %s25, %s44
      %s54 = ssub.s32 %s48, %s52
      %s55 = sor.u32 %s53, %s54
      %s56 = ssub.s32 %s26, %s40
      %s57 = sor.u32 %s55, %s56
      %p58 = scmp.eq.s32.totalorder %s57, 0
      %s60 = sadd.s32 %s59, 1
      %s61 = scalar_select %p58, %s59, %s60
      %p64 = pneg %p58
      %p65 = scmp.eq.s32.totalorder %s18, 1
      %p66 = por %p64, %p65
      %p67 = scmp.ne.s32.totalorder %s59, %s62
      %p68 = scmp.eq.s32.totalorder %s18, 0
      %p69 = por %p67, %p68
      %p70 = scmp.ne.s32.totalorder %s59, %s62
      %p71 = scmp.eq.s32.totalorder %s23, 1
      %p72 = por %p70, %p71
      %p73 = scmp.ne.s32.totalorder %s62, %s63
      %p74 = scmp.eq.s32.totalorder %s23, 0
      %p75 = por %p73, %p74
      %p76 = scmp.ne.s32.totalorder %s62, %s63
      %p77 = scmp.eq.s32.totalorder %s24, 1
      %p78 = por %p76, %p77
      %p80 = scmp.ne.s32.totalorder %s63, %s79
      %p81 = scmp.eq.s32.totalorder %s24, 0
      %p82 = por %p80, %p81
      %s83 = ssub.s32 %s25, %s44
      %s84 = ssub.s32 %s27, %s36
      %s85 = sor.u32 %s83, %s84
      %s86 = ssub.s32 %s26, %s40
      %s87 = sor.u32 %s85, %s86
      %p88 = scmp.eq.s32.totalorder %s87, 0
      %s90 = sadd.s32 %s89, 1
      %s91 = scalar_select %p88, %s89, %s90
      %p94 = pneg %p88
      %p95 = scmp.eq.s32.totalorder %s18, 1
      %p96 = por %p94, %p95
      %p97 = scmp.ne.s32.totalorder %s89, %s92
      %p98 = scmp.eq.s32.totalorder %s18, 0
      %p99 = por %p97, %p98
      %p100 = scmp.ne.s32.totalorder %s89, %s92
      %p101 = scmp.eq.s32.totalorder %s23, 1
      %p102 = por %p100, %p101
      %p103 = scmp.ne.s32.totalorder %s92, %s93
      %p104 = scmp.eq.s32.totalorder %s23, 0
      %p105 = por %p103, %p104
      %p106 = scmp.ne.s32.totalorder %s92, %s93
      %p107 = scmp.eq.s32.totalorder %s24, 1
      %p108 = por %p106, %p107
      %p110 = scmp.ne.s32.totalorder %s93, %s109
      %p111 = scmp.eq.s32.totalorder %s24, 0
      %p112 = por %p110, %p111
      %s113 = sadd.s32 %s27, 1
      %s114 = smul.u32 %s113, 16
      %p115 = scmp.lt.s32.totalorder %s114, 15
      %s116 = scalar_select %p115, %s114, 15
      %s117 = sadd.s32 %s36, 1
      %s118 = smul.u32 %s117, 16
      %p119 = scmp.lt.s32.totalorder %s118, 15
      %s120 = scalar_select %p119, %s118, 15
      %s121 = ssub.s32 %s25, %s44
      %s122 = ssub.s32 %s116, %s120
      %s123 = sor.u32 %s121, %s122
      %s124 = ssub.s32 %s26, %s40
      %s125 = sor.u32 %s123, %s124
      %p126 = scmp.eq.s32.totalorder %s125, 0
      %s128 = sadd.s32 %s127, 1
      %s129 = scalar_select %p126, %s127, %s128
      %p132 = pneg %p126
      %p133 = scmp.eq.s32.totalorder %s18, 1
      %p134 = por %p132, %p133
      %p135 = scmp.ne.s32.totalorder %s127, %s130
      %p136 = scmp.eq.s32.totalorder %s18, 0
      %p137 = por %p135, %p136
      %p138 = scmp.ne.s32.totalorder %s127, %s130
      %p139 = scmp.eq.s32.totalorder %s23, 1
      %p140 = por %p138, %p139
      %p141 = scmp.ne.s32.totalorder %s130, %s131
      %p142 = scmp.eq.s32.totalorder %s23, 0
      %p143 = por %p141, %p142
      %p144 = scmp.ne.s32.totalorder %s130, %s131
      %p145 = scmp.eq.s32.totalorder %s24, 1
      %p146 = por %p144, %p145
      %p148 = scmp.ne.s32.totalorder %s131, %s147
      %p149 = scmp.eq.s32.totalorder %s24, 0
      %p150 = por %p148, %p149
      %s151 = ssub.s32 %s25, %s44
      %s152 = ssub.s32 %s27, %s36
      %s153 = sor.u32 %s151, %s152
      %s154 = ssub.s32 %s26, %s40
      %s155 = sor.u32 %s153, %s154
      %p156 = scmp.eq.s32.totalorder %s155, 0
      %s158 = sadd.s32 %s157, 1
      %s159 = scalar_select %p156, %s157, %s158
      %p162 = pneg %p156
      %p163 = scmp.eq.s32.totalorder %s18, 1
      %p164 = por %p162, %p163
      %p165 = scmp.ne.s32.totalorder %s157, %s160
      %p166 = scmp.eq.s32.totalorder %s18, 0
      %p167 = por %p165, %p166
      %p168 = scmp.ne.s32.totalorder %s157, %s160
      %p169 = scmp.eq.s32.totalorder %s23, 1
      %p170 = por %p168, %p169
      %p171 = scmp.ne.s32.totalorder %s160, %s161
      %p172 = scmp.eq.s32.totalorder %s23, 0
      %p173 = por %p171, %p172
      %p174 = scmp.ne.s32.totalorder %s160, %s161
      %p175 = scmp.eq.s32.totalorder %s24, 1
      %p176 = por %p174, %p175
      %p178 = scmp.ne.s32.totalorder %s161, %s177
      %p179 = scmp.eq.s32.totalorder %s24, 0
      %p180 = por %p178, %p179
      %p181 = scmp.le.s32.totalorder 1, %s18
      %p182 = scmp.lt.s32.totalorder %s18, 3
      %p183 = pnand %p181, %p182
      %p184 = pneg %p183
      // Predicated region
      $region9: #{tpu_custom_call.1} parent=5 // pred_check
        _
      $region10: #{tpu_custom_call.1} parent=5 // pred_check_branch
        %186 = sbr.rel (%p183) target = $region12
      $region11: #{tpu_custom_call.1} parent=5 // pred_region
        %s187 = ssub.s32 %s18, 1
      $region12: #{tpu_custom_call.1} parent=5 // pred_fallthru
        _
      %p188 = scmp.lt.s32.totalorder %s18, 2
      // Predicated region
      $region13: #{tpu_custom_call.1} parent=5 // pred_check
        %p189 = pneg %p188
      $region14: #{tpu_custom_call.1} parent=5 // pred_check_branch
        %191 = sbr.rel (%p189) target = $region16
      $region15: #{tpu_custom_call.1} parent=5 // pred_region
        // Predicated region
        $region17: #{tpu_custom_call.1} parent=15 // pred_check
          %p192 = pneg %p69
        $region18: #{tpu_custom_call.1} parent=15 // pred_check_branch
          %194 = sbr.rel (%p192) target = $region20
        $region19: #{tpu_custom_call.1} parent=15 // pred_region
          %s195 = sand.u32 %s59, 1
          %s196 = scalar_lea.sflag [#allocation5], %s195
          %s197 = sand.u32 %s59, 1
          %s198 = smul.addr %s197, 16
          %s199 = scalar_lea.vmem [#allocation4], %s198
          %s200 = smul.u32 %s27, 16
          %s201 = ssub.s32 %s200, 1
          %p202 = scmp.gt.s32.totalorder %s201, 0
          %s203 = scalar_select %p202, %s201, 0
          %s204 = smul.u32 2, %s203
          %206 = vsyncadd %s196, 0
          %s207 = sadd.s32 %s26, %s204
          %s208 = smul.addr %s25, 32
          %s209 = sadd.s32 %s207, %s208
          %s210 = smul.addr %s209, 8
          %s211 = scalar_lea.hbm %s0, %s210
          %s212 = sshll.u32 %s211, 4
          %s213 = int_to_ptr.hbm [resolvable:$true] %s212
          %s214 = sshll.u32 %s199, 4
          %s215 = int_to_ptr.vmem [resolvable:$true] %s214
          %220 = dma.hbm_to_vmem [thread:$0]  %s213, 256, %s215, %s196, 128, 128, 8
        $region20: #{tpu_custom_call.1} parent=15 // pred_fallthru
          _
        // Predicated region
        $region21: #{tpu_custom_call.1} parent=15 // pred_check
          %p221 = pneg %p99
        $region22: #{tpu_custom_call.1} parent=15 // pred_check_branch
          %223 = sbr.rel (%p221) target = $region24
        $region23: #{tpu_custom_call.1} parent=15 // pred_region
          %s224 = sand.u32 %s18, 1
          %s225 = scalar_lea.sflag [#allocation8], %s224
          %s226 = sand.u32 %s89, 1
          %s227 = smul.addr %s226, 256
          %s228 = scalar_lea.vmem [#allocation7], %s227
          %s229 = smul.u32 32, %s27
          %231 = vsyncadd %s225, 0
          %s232 = sadd.s32 %s26, %s229
          %s233 = smul.addr %s25, 32
          %s234 = sadd.s32 %s232, %s233
          %s235 = smul.addr %s234, 8
          %s236 = scalar_lea.hbm %s1, %s235
          %s237 = sshll.u32 %s236, 4
          %s238 = int_to_ptr.hbm [resolvable:$true] %s237
          %s239 = sshll.u32 %s228, 4
          %s240 = int_to_ptr.vmem [resolvable:$true] %s239
          %245 = dma.hbm_to_vmem [thread:$0]  %s238, 4096, %s240, %s225, 128, 128, 8
        $region24: #{tpu_custom_call.1} parent=15 // pred_fallthru
          _
        // Predicated region
        $region25: #{tpu_custom_call.1} parent=15 // pred_check
          %p246 = pneg %p137
        $region26: #{tpu_custom_call.1} parent=15 // pred_check_branch
          %248 = sbr.rel (%p246) target = $region28
        $region27: #{tpu_custom_call.1} parent=15 // pred_region
          %s249 = sand.u32 %s18, 1
          %s250 = scalar_lea.sflag [#allocation8], %s249
          %s251 = sand.u32 %s127, 1
          %s252 = smul.addr %s251, 16
          %s253 = scalar_lea.vmem [#allocation9], %s252
          %s254 = sadd.s32 %s27, 1
          %s255 = smul.u32 %s254, 16
          %p256 = scmp.lt.s32.totalorder %s255, 15
          %s257 = scalar_select %p256, %s255, 15
          %s258 = smul.u32 2, %s257
          %260 = vsyncadd %s250, 0
          %s261 = sadd.s32 %s26, %s258
          %s262 = smul.addr %s25, 32
          %s263 = sadd.s32 %s261, %s262
          %s264 = smul.addr %s263, 8
          %s265 = scalar_lea.hbm %s2, %s264
          %s266 = sshll.u32 %s265, 4
          %s267 = int_to_ptr.hbm [resolvable:$true] %s266
          %s268 = sshll.u32 %s253, 4
          %s269 = int_to_ptr.vmem [resolvable:$true] %s268
          %274 = dma.hbm_to_vmem [thread:$0]  %s267, 256, %s269, %s250, 128, 128, 8
        $region28: #{tpu_custom_call.1} parent=15 // pred_fallthru
          _
      $region16: #{tpu_custom_call.1} parent=5 // pred_fallthru
        _
      %p275 = scmp.le.s32.totalorder 1, %s18
      %p276 = scmp.lt.s32.totalorder %s18, 3
      %p277 = pnand %p275, %p276
      %p278 = pneg %p277
      // Predicated region
      $region29: #{tpu_custom_call.1} parent=5 // pred_check
        _
      $region30: #{tpu_custom_call.1} parent=5 // pred_check_branch
        %280 = sbr.rel (%p277) target = $region32
      $region31: #{tpu_custom_call.1} parent=5 // pred_region
        %s281 = ssub.s32 %s18, 1
        %s282 = sand.u32 %s62, 1
        %s283 = scalar_lea.sflag [#allocation5], %s282
        %s284 = sand.u32 %s62, 1
        %s285 = smul.addr %s284, 16
        %s286 = scalar_lea.vmem [#allocation4], %s285
        // Predicated region
        $region33: #{tpu_custom_call.1} parent=31 // pred_check
          %p287 = pneg %p75
        $region34: #{tpu_custom_call.1} parent=31 // pred_check_branch
          %289 = sbr.rel (%p287) target = $region36
        $region35: #{tpu_custom_call.1} parent=31 // pred_region
          %291 = dma.done %s283, 256
        $region36: #{tpu_custom_call.1} parent=31 // pred_fallthru
          _
        %s292 = sand.u32 %s23, 1
        %s293 = scalar_lea.sflag [#allocation8], %s292
        %s294 = sand.u32 %s92, 1
        %s295 = smul.addr %s294, 256
        %s296 = scalar_lea.vmem [#allocation7], %s295
        // Predicated region
        $region37: #{tpu_custom_call.1} parent=31 // pred_check
          %p297 = pneg %p105
        $region38: #{tpu_custom_call.1} parent=31 // pred_check_branch
          %299 = sbr.rel (%p297) target = $region40
        $region39: #{tpu_custom_call.1} parent=31 // pred_region
          %301 = dma.done %s293, 4096
        $region40: #{tpu_custom_call.1} parent=31 // pred_fallthru
          _
        %s302 = sand.u32 %s23, 1
        %s303 = scalar_lea.sflag [#allocation8], %s302
        %s304 = sand.u32 %s130, 1
        %s305 = smul.addr %s304, 16
        %s306 = scalar_lea.vmem [#allocation9], %s305
        // Predicated region
        $region41: #{tpu_custom_call.1} parent=31 // pred_check
          %p307 = pneg %p143
        $region42: #{tpu_custom_call.1} parent=31 // pred_check_branch
          %309 = sbr.rel (%p307) target = $region44
        $region43: #{tpu_custom_call.1} parent=31 // pred_region
          %311 = dma.done %s303, 256
        $region44: #{tpu_custom_call.1} parent=31 // pred_fallthru
          _
        %s312 = sand.u32 %s62, 1
        %s313 = scalar_lea.sflag [#allocation5], %s312
        %s314 = sand.u32 %s62, 1
        %s315 = smul.addr %s314, 16
        %s316 = scalar_lea.vmem [#allocation4], %s315
        %p317 = pneg %p75
        %p318 = pneg %p72
        %s319 = sand.u32 %s23, 1
        %s320 = scalar_lea.sflag [#allocation8], %s319
        %s321 = sand.u32 %s92, 1
        %s322 = smul.addr %s321, 256
        %s323 = scalar_lea.vmem [#allocation7], %s322
        %p324 = pneg %p105
        %p325 = pneg %p102
        %s326 = sand.u32 %s23, 1
        %s327 = scalar_lea.sflag [#allocation8], %s326
        %s328 = sand.u32 %s130, 1
        %s329 = smul.addr %s328, 16
        %s330 = scalar_lea.vmem [#allocation9], %s329
        %p331 = pneg %p143
        %p332 = pneg %p140
        %p333 = pneg %p173
        %p334 = pneg %p170
        %s335 = sand.u32 %s160, 1
        %s336 = scalar_lea.sflag [#allocation6], %s335
        %s337 = sand.u32 %s160, 1
        %s338 = smul.addr %s337, 256
        %s339 = scalar_lea.vmem [#allocation10], %s338
        %s340 = smul.u32 %s30, 16
        %s341 = ssub.s32 %s340, 1
        %p342 = scmp.gt.s32.totalorder %s341, 0
        %s343 = scalar_select %p342, %s341, 0
        %s344 = smul.u32 2, %s343
        %s345 = smul.u32 32, %s30
        %s346 = sadd.s32 %s30, 1
        %s347 = smul.u32 %s346, 16
        %p348 = scmp.lt.s32.totalorder %s347, 15
        %s349 = scalar_select %p348, %s347, 15
        %s350 = smul.u32 2, %s349
        %s351 = smul.u32 32, %s30
        %v352 = vld [vmem:[%s286 + $0x4] sm:$0xff]
        %v353 = vld [vmem:[%s286 + $0xc] sm:$0xf]
        %354 = vst [vmem:[#allocation2 + $0x4] sm:$0xff] %v352
        %355 = vst [vmem:[#allocation2 + $0xc] sm:$0xf] %v353
        %v356 = vld [vmem:[%s296] sm:$0xff]
        %v357 = vld [vmem:[%s296 + $0x8] sm:$0xff]
        %v358 = vld [vmem:[%s296 + $0x10] sm:$0xff]
        %v359 = vld [vmem:[%s296 + $0x18] sm:$0xff]
        %v360 = vld [vmem:[%s296 + $0x20] sm:$0xff]
        %v361 = vld [vmem:[%s296 + $0x28] sm:$0xff]
        %v362 = vld [vmem:[%s296 + $0x30] sm:$0xff]
        %v363 = vld [vmem:[%s296 + $0x38] sm:$0xff]
        %v364 = vld [vmem:[%s296 + $0x40] sm:$0xff]
        %v365 = vld [vmem:[%s296 + $0x48] sm:$0xff]
        %v366 = vld [vmem:[%s296 + $0x50] sm:$0xff]
        %v367 = vld [vmem:[%s296 + $0x58] sm:$0xff]
        %v368 = vld [vmem:[%s296 + $0x60] sm:$0xff]
        %v369 = vld [vmem:[%s296 + $0x68] sm:$0xff]
        %v370 = vld [vmem:[%s296 + $0x70] sm:$0xff]
        %v371 = vld [vmem:[%s296 + $0x78] sm:$0xff]
        %v372 = vld [vmem:[%s296 + $0x80] sm:$0xff]
        %v373 = vld [vmem:[%s296 + $0x88] sm:$0xff]
        %v374 = vld [vmem:[%s296 + $0x90] sm:$0xff]
        %v375 = vld [vmem:[%s296 + $0x98] sm:$0xff]
        %v376 = vld [vmem:[%s296 + $0xa0] sm:$0xff]
        %v377 = vld [vmem:[%s296 + $0xa8] sm:$0xff]
        %v378 = vld [vmem:[%s296 + $0xb0] sm:$0xff]
        %v379 = vld [vmem:[%s296 + $0xb8] sm:$0xff]
        %v380 = vld [vmem:[%s296 + $0xc0] sm:$0xff]
        %v381 = vld [vmem:[%s296 + $0xc8] sm:$0xff]
        %v382 = vld [vmem:[%s296 + $0xd0] sm:$0xff]
        %v383 = vld [vmem:[%s296 + $0xd8] sm:$0xff]
        %v384 = vld [vmem:[%s296 + $0xe0] sm:$0xff]
        %v385 = vld [vmem:[%s296 + $0xe8] sm:$0xff]
        %v386 = vld [vmem:[%s296 + $0xf0] sm:$0xff]
        %v387 = vld [vmem:[%s296 + $0xf8] sm:$0xff]
        %388 = vst [vmem:[#allocation2 + $0x10] sm:$0xff] %v356
        %389 = vst [vmem:[#allocation2 + $0x18] sm:$0xff] %v357
        %390 = vst [vmem:[#allocation2 + $0x20] sm:$0xff] %v358
        %391 = vst [vmem:[#allocation2 + $0x28] sm:$0xff] %v359
        %392 = vst [vmem:[#allocation2 + $0x30] sm:$0xff] %v360
        %393 = vst [vmem:[#allocation2 + $0x38] sm:$0xff] %v361
        %394 = vst [vmem:[#allocation2 + $0x40] sm:$0xff] %v362
        %395 = vst [vmem:[#allocation2 + $0x48] sm:$0xff] %v363
        %396 = vst [vmem:[#allocation2 + $0x50] sm:$0xff] %v364
        %397 = vst [vmem:[#allocation2 + $0x58] sm:$0xff] %v365
        %398 = vst [vmem:[#allocation2 + $0x60] sm:$0xff] %v366
        %399 = vst [vmem:[#allocation2 + $0x68] sm:$0xff] %v367
        %400 = vst [vmem:[#allocation2 + $0x70] sm:$0xff] %v368
        %401 = vst [vmem:[#allocation2 + $0x78] sm:$0xff] %v369
        %402 = vst [vmem:[#allocation2 + $0x80] sm:$0xff] %v370
        %403 = vst [vmem:[#allocation2 + $0x88] sm:$0xff] %v371
        %404 = vst [vmem:[#allocation2 + $0x90] sm:$0xff] %v372
        %405 = vst [vmem:[#allocation2 + $0x98] sm:$0xff] %v373
        %406 = vst [vmem:[#allocation2 + $0xa0] sm:$0xff] %v374
        %407 = vst [vmem:[#allocation2 + $0xa8] sm:$0xff] %v375
        %408 = vst [vmem:[#allocation2 + $0xb0] sm:$0xff] %v376
        %409 = vst [vmem:[#allocation2 + $0xb8] sm:$0xff] %v377
        %410 = vst [vmem:[#allocation2 + $0xc0] sm:$0xff] %v378
        %411 = vst [vmem:[#allocation2 + $0xc8] sm:$0xff] %v379
        %412 = vst [vmem:[#allocation2 + $0xd0] sm:$0xff] %v380
        %413 = vst [vmem:[#allocation2 + $0xd8] sm:$0xff] %v381
        %414 = vst [vmem:[#allocation2 + $0xe0] sm:$0xff] %v382
        %415 = vst [vmem:[#allocation2 + $0xe8] sm:$0xff] %v383
        %416 = vst [vmem:[#allocation2 + $0xf0] sm:$0xff] %v384
        %417 = vst [vmem:[#allocation2 + $0xf8] sm:$0xff] %v385
        %418 = vst [vmem:[#allocation2 + $0x100] sm:$0xff] %v386
        %419 = vst [vmem:[#allocation2 + $0x108] sm:$0xff] %v387
        %v420 = vld [vmem:[%s306] sm:$0xff]
        %v421 = vld [vmem:[%s306 + $0x8] sm:$0xf]
        %422 = vst [vmem:[#allocation2 + $0x110] sm:$0xff] %v420
        %423 = vst [vmem:[#allocation2 + $0x118] sm:$0xf] %v421
        %p424 = scmp.eq.s32.totalorder %s30, 0
        // Predicated region
        $region45: #{tpu_custom_call.1} parent=31 // pred_check
          %p425 = pneg %p424
        $region46: #{tpu_custom_call.1} parent=31 // pred_check_branch
          %427 = sbr.rel (%p425) target = $region48
        $region47: #{tpu_custom_call.1} parent=31 // pred_region
          %v428 = vld [vmem:[#allocation2 + $0x10] sm:$0x1]
          %v429 = vperm.slane %v428, 0
          %430 = vst [vmem:[#allocation2 + $0x4] sm:$0xff] %v429
          %431 = vst [vmem:[#allocation2 + $0xc] sm:$0xf] %v429
          %v432 = vld [vmem:[#allocation2 + $0x10f] sm:$0x1]
          %v433 = vperm.slane %v432, 0
          %434 = vst [vmem:[#allocation2 + $0x110] sm:$0xff] %v433
          %435 = vst [vmem:[#allocation2 + $0x118] sm:$0xf] %v433
        $region48: #{tpu_custom_call.1} parent=31 // pred_fallthru
          _
        loop: start=0, step=1, limit=5
        $region49: #{tpu_custom_call.1} parent=31 // loop_pre_header
          _
        $region50: #{tpu_custom_call.1} parent=31 // loop_header
          %s437 = sphi 0, %s441
          %p438 = scmp.ge.s32.totalorder %s437, 5
        $region51: #{tpu_custom_call.1} parent=31 // loop_header_branch
          %440 = sbr.rel (%p438) target = $region55
        $region52: #{tpu_custom_call.1} parent=31 // loop_body
          %s442 = smul.u32 %s437, 64
          %s443 = sadd.s32 %s442, 4
          %s444 = scalar_lea.vmem [#allocation2], %s443
          %v445 = vld [vmem:[%s444] sm:$0xff]
          %v446 = vld [vmem:[%s444 + $0x8] sm:$0xff]
          %v447 = vld [vmem:[%s444 + $0x10] sm:$0xff]
          %v448 = vld [vmem:[%s444 + $0x18] sm:$0xff]
          %v449 = vld [vmem:[%s444 + $0x20] sm:$0xff]
          %v450 = vld [vmem:[%s444 + $0x28] sm:$0xff]
          %v451 = vld [vmem:[%s444 + $0x30] sm:$0xff]
          %v452 = vld [vmem:[%s444 + $0x38] sm:$0xff]
          %s453 = sadd.s32 %s442, 5
          %s454 = scalar_lea.vmem [#allocation2], %s453
          %v455 = vld [vmem:[%s454] sm:$0xff]
          %v456 = vld [vmem:[%s454 + $0x8] sm:$0xff]
          %v457 = vld [vmem:[%s454 + $0x10] sm:$0xff]
          %v458 = vld [vmem:[%s454 + $0x18] sm:$0xff]
          %v459 = vld [vmem:[%s454 + $0x20] sm:$0xff]
          %v460 = vld [vmem:[%s454 + $0x28] sm:$0xff]
          %v461 = vld [vmem:[%s454 + $0x30] sm:$0xff]
          %v462 = vld [vmem:[%s454 + $0x38] sm:$0xff]
          %v463 = vadd.f32 %v445, %v455
          %v464 = vadd.f32 %v446, %v456
          %v465 = vadd.f32 %v447, %v457
          %v466 = vadd.f32 %v448, %v458
          %v467 = vadd.f32 %v449, %v459
          %v468 = vadd.f32 %v450, %v460
          %v469 = vadd.f32 %v451, %v461
          %v470 = vadd.f32 %v452, %v462
          %s471 = sadd.s32 %s442, 6
          %s472 = scalar_lea.vmem [#allocation2], %s471
          %v473 = vld [vmem:[%s472] sm:$0xff]
          %v474 = vld [vmem:[%s472 + $0x8] sm:$0xff]
          %v475 = vld [vmem:[%s472 + $0x10] sm:$0xff]
          %v476 = vld [vmem:[%s472 + $0x18] sm:$0xff]
          %v477 = vld [vmem:[%s472 + $0x20] sm:$0xff]
          %v478 = vld [vmem:[%s472 + $0x28] sm:$0xff]
          %v479 = vld [vmem:[%s472 + $0x30] sm:$0xff]
          %v480 = vld [vmem:[%s472 + $0x38] sm:$0xff]
          %v481 = vadd.f32 %v463, %v473
          %v482 = vadd.f32 %v464, %v474
          %v483 = vadd.f32 %v465, %v475
          %v484 = vadd.f32 %v466, %v476
          %v485 = vadd.f32 %v467, %v477
          %v486 = vadd.f32 %v468, %v478
          %v487 = vadd.f32 %v469, %v479
          %v488 = vadd.f32 %v470, %v480
          %s489 = sadd.s32 %s442, 7
          %s490 = scalar_lea.vmem [#allocation2], %s489
          %v491 = vld [vmem:[%s490] sm:$0xff]
          %v492 = vld [vmem:[%s490 + $0x8] sm:$0xff]
          %v493 = vld [vmem:[%s490 + $0x10] sm:$0xff]
          %v494 = vld [vmem:[%s490 + $0x18] sm:$0xff]
          %v495 = vld [vmem:[%s490 + $0x20] sm:$0xff]
          %v496 = vld [vmem:[%s490 + $0x28] sm:$0xff]
          %v497 = vld [vmem:[%s490 + $0x30] sm:$0xff]
          %v498 = vld [vmem:[%s490 + $0x38] sm:$0xff]
          %v499 = vadd.f32 %v481, %v491
          %v500 = vadd.f32 %v482, %v492
          %v501 = vadd.f32 %v483, %v493
          %v502 = vadd.f32 %v484, %v494
          %v503 = vadd.f32 %v485, %v495
          %v504 = vadd.f32 %v486, %v496
          %v505 = vadd.f32 %v487, %v497
          %v506 = vadd.f32 %v488, %v498
          %s507 = sadd.s32 %s442, 8
          %s508 = scalar_lea.vmem [#allocation2], %s507
          %v509 = vld [vmem:[%s508] sm:$0xff]
          %v510 = vld [vmem:[%s508 + $0x8] sm:$0xff]
          %v511 = vld [vmem:[%s508 + $0x10] sm:$0xff]
          %v512 = vld [vmem:[%s508 + $0x18] sm:$0xff]
          %v513 = vld [vmem:[%s508 + $0x20] sm:$0xff]
          %v514 = vld [vmem:[%s508 + $0x28] sm:$0xff]
          %v515 = vld [vmem:[%s508 + $0x30] sm:$0xff]
          %v516 = vld [vmem:[%s508 + $0x38] sm:$0xff]
          %v517 = vadd.f32 %v499, %v509
          %v518 = vadd.f32 %v500, %v510
          %v519 = vadd.f32 %v501, %v511
          %v520 = vadd.f32 %v502, %v512
          %v521 = vadd.f32 %v503, %v513
          %v522 = vadd.f32 %v504, %v514
          %v523 = vadd.f32 %v505, %v515
          %v524 = vadd.f32 %v506, %v516
          %s525 = sadd.s32 %s442, 9
          %s526 = scalar_lea.vmem [#allocation2], %s525
          %v527 = vld [vmem:[%s526] sm:$0xff]
          %v528 = vld [vmem:[%s526 + $0x8] sm:$0xff]
          %v529 = vld [vmem:[%s526 + $0x10] sm:$0xff]
          %v530 = vld [vmem:[%s526 + $0x18] sm:$0xff]
          %v531 = vld [vmem:[%s526 + $0x20] sm:$0xff]
          %v532 = vld [vmem:[%s526 + $0x28] sm:$0xff]
          %v533 = vld [vmem:[%s526 + $0x30] sm:$0xff]
          %v534 = vld [vmem:[%s526 + $0x38] sm:$0xff]
          %v535 = vadd.f32 %v517, %v527
          %v536 = vadd.f32 %v518, %v528
          %v537 = vadd.f32 %v519, %v529
          %v538 = vadd.f32 %v520, %v530
          %v539 = vadd.f32 %v521, %v531
          %v540 = vadd.f32 %v522, %v532
          %v541 = vadd.f32 %v523, %v533
          %v542 = vadd.f32 %v524, %v534
          %s543 = sadd.s32 %s442, 10
          %s544 = scalar_lea.vmem [#allocation2], %s543
          %v545 = vld [vmem:[%s544] sm:$0xff]
          %v546 = vld [vmem:[%s544 + $0x8] sm:$0xff]
          %v547 = vld [vmem:[%s544 + $0x10] sm:$0xff]
          %v548 = vld [vmem:[%s544 + $0x18] sm:$0xff]
          %v549 = vld [vmem:[%s544 + $0x20] sm:$0xff]
          %v550 = vld [vmem:[%s544 + $0x28] sm:$0xff]
          %v551 = vld [vmem:[%s544 + $0x30] sm:$0xff]
          %v552 = vld [vmem:[%s544 + $0x38] sm:$0xff]
          %v553 = vadd.f32 %v535, %v545
          %v554 = vadd.f32 %v536, %v546
          %v555 = vadd.f32 %v537, %v547
          %v556 = vadd.f32 %v538, %v548
          %v557 = vadd.f32 %v539, %v549
          %v558 = vadd.f32 %v540, %v550
          %v559 = vadd.f32 %v541, %v551
          %v560 = vadd.f32 %v542, %v552
          %s561 = sadd.s32 %s442, 11
          %s562 = scalar_lea.vmem [#allocation2], %s561
          %v563 = vld [vmem:[%s562] sm:$0xff]
          %v564 = vld [vmem:[%s562 + $0x8] sm:$0xff]
          %v565 = vld [vmem:[%s562 + $0x10] sm:$0xff]
          %v566 = vld [vmem:[%s562 + $0x18] sm:$0xff]
          %v567 = vld [vmem:[%s562 + $0x20] sm:$0xff]
          %v568 = vld [vmem:[%s562 + $0x28] sm:$0xff]
          %v569 = vld [vmem:[%s562 + $0x30] sm:$0xff]
          %v570 = vld [vmem:[%s562 + $0x38] sm:$0xff]
          %v571 = vadd.f32 %v553, %v563
          %v572 = vadd.f32 %v554, %v564
          %v573 = vadd.f32 %v555, %v565
          %v574 = vadd.f32 %v556, %v566
          %v575 = vadd.f32 %v557, %v567
          %v576 = vadd.f32 %v558, %v568
          %v577 = vadd.f32 %v559, %v569
          %v578 = vadd.f32 %v560, %v570
          %s579 = scalar_lea.vmem [#allocation3], %s442
          %580 = vst [vmem:[%s579] sm:$0xff] %v571
          %581 = vst [vmem:[%s579 + $0x8] sm:$0xff] %v572
          %582 = vst [vmem:[%s579 + $0x10] sm:$0xff] %v573
          %583 = vst [vmem:[%s579 + $0x18] sm:$0xff] %v574
          %584 = vst [vmem:[%s579 + $0x20] sm:$0xff] %v575
          %585 = vst [vmem:[%s579 + $0x28] sm:$0xff] %v576
          %586 = vst [vmem:[%s579 + $0x30] sm:$0xff] %v577
          %587 = vst [vmem:[%s579 + $0x38] sm:$0xff] %v578
        $region53: #{tpu_custom_call.1} parent=31 // loop_footer
          %s441 = sadd.s32 1, %s437
        $region54: #{tpu_custom_call.1} parent=31 // loop_footer_branch
          %436 = sbr.rel target = $region50
        $region55: #{tpu_custom_call.1} parent=31 // loop_exit
          _
        loop: start=0, step=1, limit=4
        $region56: #{tpu_custom_call.1} parent=31 // loop_pre_header
          _
        $region57: #{tpu_custom_call.1} parent=31 // loop_header
          %s589 = sphi 0, %s593
          %p590 = scmp.ge.s32.totalorder %s589, 4
        $region58: #{tpu_custom_call.1} parent=31 // loop_header_branch
          %592 = sbr.rel (%p590) target = $region62
        $region59: #{tpu_custom_call.1} parent=31 // loop_body
          %s594 = smul.u32 %s589, 64
          %s595 = scalar_lea.vmem [#allocation3], %s594
          %v596 = vld [vmem:[%s595] sm:$0xff]
          %v597 = vld [vmem:[%s595 + $0x8] sm:$0xff]
          %v598 = vld [vmem:[%s595 + $0x10] sm:$0xff]
          %v599 = vld [vmem:[%s595 + $0x18] sm:$0xff]
          %v600 = vld [vmem:[%s595 + $0x20] sm:$0xff]
          %v601 = vld [vmem:[%s595 + $0x28] sm:$0xff]
          %v602 = vld [vmem:[%s595 + $0x30] sm:$0xff]
          %v603 = vld [vmem:[%s595 + $0x38] sm:$0xff]
          %s604 = sadd.s32 %s594, 8
          %s605 = scalar_lea.vmem [#allocation3], %s604
          %v606 = vld [vmem:[%s605] sm:$0xff]
          %v607 = vld [vmem:[%s605 + $0x8] sm:$0xff]
          %v608 = vld [vmem:[%s605 + $0x10] sm:$0xff]
          %v609 = vld [vmem:[%s605 + $0x18] sm:$0xff]
          %v610 = vld [vmem:[%s605 + $0x20] sm:$0xff]
          %v611 = vld [vmem:[%s605 + $0x28] sm:$0xff]
          %v612 = vld [vmem:[%s605 + $0x30] sm:$0xff]
          %v613 = vld [vmem:[%s605 + $0x38] sm:$0xff]
          %v614 = vadd.f32 %v596, %v606
          %v615 = vadd.f32 %v597, %v607
          %v616 = vadd.f32 %v598, %v608
          %v617 = vadd.f32 %v599, %v609
          %v618 = vadd.f32 %v600, %v610
          %v619 = vadd.f32 %v601, %v611
          %v620 = vadd.f32 %v602, %v612
          %v621 = vadd.f32 %v603, %v613
          %s622 = sadd.s32 %s594, 16
          %s623 = scalar_lea.vmem [#allocation3], %s622
          %v624 = vld [vmem:[%s623] sm:$0xff]
          %v625 = vld [vmem:[%s623 + $0x8] sm:$0xff]
          %v626 = vld [vmem:[%s623 + $0x10] sm:$0xff]
          %v627 = vld [vmem:[%s623 + $0x18] sm:$0xff]
          %v628 = vld [vmem:[%s623 + $0x20] sm:$0xff]
          %v629 = vld [vmem:[%s623 + $0x28] sm:$0xff]
          %v630 = vld [vmem:[%s623 + $0x30] sm:$0xff]
          %v631 = vld [vmem:[%s623 + $0x38] sm:$0xff]
          %v632 = vadd.f32 %v614, %v624
          %v633 = vadd.f32 %v615, %v625
          %v634 = vadd.f32 %v616, %v626
          %v635 = vadd.f32 %v617, %v627
          %v636 = vadd.f32 %v618, %v628
          %v637 = vadd.f32 %v619, %v629
          %v638 = vadd.f32 %v620, %v630
          %v639 = vadd.f32 %v621, %v631
          %s640 = sadd.s32 %s594, 28
          %s641 = scalar_lea.vmem [#allocation2], %s640
          %v642 = vld [vmem:[%s641] sm:$0xff]
          %v643 = vld [vmem:[%s641 + $0x8] sm:$0xff]
          %v644 = vld [vmem:[%s641 + $0x10] sm:$0xff]
          %v645 = vld [vmem:[%s641 + $0x18] sm:$0xff]
          %v646 = vld [vmem:[%s641 + $0x20] sm:$0xff]
          %v647 = vld [vmem:[%s641 + $0x28] sm:$0xff]
          %v648 = vld [vmem:[%s641 + $0x30] sm:$0xff]
          %v649 = vld [vmem:[%s641 + $0x38] sm:$0xff]
          %v650 = vadd.f32 %v632, %v642
          %v651 = vadd.f32 %v633, %v643
          %v652 = vadd.f32 %v634, %v644
          %v653 = vadd.f32 %v635, %v645
          %v654 = vadd.f32 %v636, %v646
          %v655 = vadd.f32 %v637, %v647
          %v656 = vadd.f32 %v638, %v648
          %v657 = vadd.f32 %v639, %v649
          %v658 = vmul.f32 %v650, 0.04
          %v659 = vmul.f32 %v651, 0.04
          %v660 = vmul.f32 %v652, 0.04
          %v661 = vmul.f32 %v653, 0.04
          %v662 = vmul.f32 %v654, 0.04
          %v663 = vmul.f32 %v655, 0.04
          %v664 = vmul.f32 %v656, 0.04
          %v665 = vmul.f32 %v657, 0.04
          %s666 = scalar_lea.vmem %s339, %s594 [#allocation10]
          %667 = vst [vmem:[%s666] sm:$0xff] %v658
          %668 = vst [vmem:[%s666 + $0x8] sm:$0xff] %v659
          %669 = vst [vmem:[%s666 + $0x10] sm:$0xff] %v660
          %670 = vst [vmem:[%s666 + $0x18] sm:$0xff] %v661
          %671 = vst [vmem:[%s666 + $0x20] sm:$0xff] %v662
          %672 = vst [vmem:[%s666 + $0x28] sm:$0xff] %v663
          %673 = vst [vmem:[%s666 + $0x30] sm:$0xff] %v664
          %674 = vst [vmem:[%s666 + $0x38] sm:$0xff] %v665
        $region60: #{tpu_custom_call.1} parent=31 // loop_footer
          %s593 = sadd.s32 1, %s589
        $region61: #{tpu_custom_call.1} parent=31 // loop_footer_branch
          %588 = sbr.rel target = $region57
        $region62: #{tpu_custom_call.1} parent=31 // loop_exit
          _
        %s675 = sand.u32 %s160, 1
        %s676 = scalar_lea.sflag [#allocation6], %s675
        %s677 = sand.u32 %s160, 1
        %s678 = smul.addr %s677, 256
        %s679 = scalar_lea.vmem [#allocation10], %s678
        // Predicated region
        $region63: #{tpu_custom_call.1} parent=31 // pred_check
          %p680 = pneg %p170
        $region64: #{tpu_custom_call.1} parent=31 // pred_check_branch
          %682 = sbr.rel (%p680) target = $region66
        $region65: #{tpu_custom_call.1} parent=31 // pred_region
          %s683 = smul.u32 32, %s30
          %685 = vsyncadd %s676, 0
          %s686 = sadd.s32 %s29, %s683
          %s687 = smul.addr %s28, 32
          %s688 = sadd.s32 %s686, %s687
          %s689 = smul.addr %s688, 8
          %s690 = scalar_lea.hbm %s3, %s689
          %s691 = sshll.u32 %s679, 4
          %s692 = int_to_ptr.vmem [resolvable:$true] %s691
          %s693 = sshll.u32 %s690, 4
          %s694 = int_to_ptr.hbm [resolvable:$true] %s693
          %699 = dma.vmem_to_hbm [thread:$0]  %s692, 4096, %s694, %s676, 128, 128, 8
        $region66: #{tpu_custom_call.1} parent=31 // pred_fallthru
          _
      $region32: #{tpu_custom_call.1} parent=5 // pred_fallthru
        _
      %p700 = scmp.le.s32.totalorder 2, %s18
      // Predicated region
      $region67: #{tpu_custom_call.1} parent=5 // pred_check
        %p701 = pneg %p700
      $region68: #{tpu_custom_call.1} parent=5 // pred_check_branch
        %703 = sbr.rel (%p701) target = $region70
      $region69: #{tpu_custom_call.1} parent=5 // pred_region
        %s704 = ssub.s32 %s18, 2
        // Predicated region
        $region71: #{tpu_custom_call.1} parent=69 // pred_check
          %p705 = pneg %p176
        $region72: #{tpu_custom_call.1} parent=69 // pred_check_branch
          %707 = sbr.rel (%p705) target = $region74
        $region73: #{tpu_custom_call.1} parent=69 // pred_region
          %s708 = sand.u32 %s161, 1
          %s709 = scalar_lea.sflag [#allocation6], %s708
          %s710 = sand.u32 %s161, 1
          %s711 = smul.addr %s710, 256
          %s712 = scalar_lea.vmem [#allocation10], %s711
          %714 = dma.done %s709, 4096
        $region74: #{tpu_custom_call.1} parent=69 // pred_fallthru
          _
      $region70: #{tpu_custom_call.1} parent=5 // pred_fallthru
        _
    $region6: #{tpu_custom_call.1} parent=1 // loop_footer
      %s22 = sadd.s32 1, %s18
    $region7: #{tpu_custom_call.1} parent=1 // loop_footer_branch
      %17 = sbr.rel target = $region3
    $region8: #{tpu_custom_call.1} parent=1 // loop_exit
      _
    %715 = vsyncpa [#allocation5], 1
    %s716 = scalar_lea.sflag [#allocation5], 1
    %717 = vsyncpa %s716, 1
    %718 = vsyncpa [#allocation8], 1
    %s719 = scalar_lea.sflag [#allocation8], 1
    %720 = vsyncpa %s719, 1
    %721 = vsyncpa [#allocation6], 1
    %s722 = scalar_lea.sflag [#allocation6], 1
    %723 = vsyncpa %s722, 1

</llo_original>
